<compile_context>
chip_gen: v6e
topology: v6e:2x2x1
jax: 0.10.0
libtpu: 0.0.40
codegen_flags: <defaults>
</compile_context>

<pallas_src>
import functools

import jax
import jax.numpy as jnp
from jax.experimental import pallas as pl
from jax.experimental.pallas import tpu as pltpu


def _round_up(x: int, m: int) -> int:
    return ((x + m - 1) // m) * m


def _choose_tile(P: int) -> tuple[int, int]:
    """Pick pixel-tile TP and padded pixel count P_pad (multiple of TP).

    Small P -> a single lane-dense tile. Large P -> TP in [512, 4096] aiming
    for ~8 grid steps (v7x megacore sharding) with padding waste bounded by one
    tile. Per-block VMEM stays small (channels <= 64 in NB201), well under the
    scoped-VMEM defaults on v5e/v6e/v7x.
    """
    p128 = _round_up(P, 128)
    if p128 <= 2048:
        return p128, p128
    tp = max(512, min(4096, _round_up(p128 // 8, 128)))
    return tp, _round_up(p128, tp)


# ----------------------------- kernels -------------------------------------


def _conv_stats_kernel(x_ref, w_ref, o_ref, sum_ref, sq_ref, *, apply_relu):
    """(optional relu) -> single 1x1-conv MXU matmul -> pre-BN tile + per-tile
    per-channel partial sum / sum-of-squares (f32, for fused BN statistics).

    No bias is added here: padded tail columns of the input are zero, so they
    contribute exactly zero to the partial sums, and the conv bias is folded
    analytically into the BN scale/shift in the wrapper.
    """
    x = x_ref[...].astype(jnp.float32)
    if apply_relu:
        x = jnp.maximum(x, 0.0)
    y = jnp.dot(w_ref[...].astype(jnp.float32), x,
                preferred_element_type=jnp.float32)
    o_ref[...] = y.astype(o_ref.dtype)
    sum_ref[...] = jnp.sum(y, axis=1, keepdims=True)[None]
    sq_ref[...] = jnp.sum(y * y, axis=1, keepdims=True)[None]


def _bn_apply_kernel(o_ref, scale_ref, shift_ref, out_ref):
    """Per-channel affine normalization: out = o*scale + shift (f32 math)."""
    out_ref[...] = (o_ref[...].astype(jnp.float32) * scale_ref[...]
                    + shift_ref[...]).astype(out_ref.dtype)


# ----------------------------- wrapper --------------------------------------


def factorized_reduce_forward(x, *, stride, w1, w2=None, b1=None, b2=None,
                              gamma=None, beta=None, eps=1e-5,
                              intermediate_dtype=jnp.bfloat16):
    """FactorizedReduce forward. x is NCHW.

    stride == 2: w1 (C_out//2, C_in), w2 (C_out - C_out//2, C_in)
    stride == 1: w1 (C_out, C_in)
    b1/b2: optional conv biases (present when affine=False in the reference).
    gamma/beta: optional BN affine parameters (present when affine=True).
    """
    N, C_in, H, W = x.shape
    out_dtype = x.dtype

    if stride == 2:
        assert w2 is not None, "stride==2 requires two conv weights"
        C1, C2 = int(w1.shape[0]), int(w2.shape[0])
        C_out = C1 + C2
        Ho, Wo = (H + 1) // 2, (W + 1) // 2
        # conv1 samples even positions; conv2 samples odd positions with a zero
        # at the bottom/right edge. relu(0)==0 so relu can be applied in-kernel
        # after the gather. Only the tiny downsampled odd stream is padded.
        x_even = x[:, :, ::2, ::2]
        x_odd = x[:, :, 1::2, 1::2]
        ph, pw = Ho - x_odd.shape[2], Wo - x_odd.shape[3]
        if ph or pw:
            x_odd = jnp.pad(x_odd, ((0, 0), (0, 0), (0, ph), (0, pw)))
        xs = jnp.concatenate([x_even, x_odd], axis=1)        # (N, 2*C_in, Ho, Wo)
        Kc = 2 * C_in
        P = N * Ho * Wo
        X = jnp.transpose(xs, (1, 0, 2, 3)).reshape(Kc, P)
        # Block-diagonal weight: the two 1x1 convs + channel concat become one
        # MXU matmul with a single full-tile store.
        Wm = jnp.zeros((C_out, Kc), jnp.float32)
        Wm = Wm.at[:C1, :C_in].set(w1.astype(jnp.float32))
        Wm = Wm.at[C1:, C_in:].set(w2.astype(jnp.float32))
        bias = jnp.concatenate([
            jnp.zeros((C1,), jnp.float32) if b1 is None else b1.astype(jnp.float32),
            jnp.zeros((C2,), jnp.float32) if b2 is None else b2.astype(jnp.float32),
        ])
        apply_relu = True
    elif stride == 1:
        C_out = int(w1.shape[0])
        Kc = C_in
        Ho, Wo = H, W
        P = N * H * W
        X = jnp.transpose(x, (1, 0, 2, 3)).reshape(Kc, P)
        Wm = w1.astype(jnp.float32)
        bias = (jnp.zeros((C_out,), jnp.float32) if b1 is None
                else b1.astype(jnp.float32))
        apply_relu = False
    else:
        raise ValueError(f"Invalid stride: {stride}")

    # Lane-dense pixel axis, padded to a multiple of the tile.
    TP, P_pad = _choose_tile(P)
    if P_pad != P:
        X = jnp.pad(X, ((0, 0), (0, P_pad - P)))   # zero cols -> zero conv output
    n_tiles = P_pad // TP
    grid = (n_tiles,)
    parallel = pltpu.CompilerParams(dimension_semantics=("parallel",))

    # ---- pass 1: (relu +) fused 1x1 conv + per-tile BN partial sums ----
    o_pre, psum, psq = pl.pallas_call(
        functools.partial(_conv_stats_kernel, apply_relu=apply_relu),
        out_shape=(
            jax.ShapeDtypeStruct((C_out, P_pad), intermediate_dtype),
            jax.ShapeDtypeStruct((n_tiles, C_out, 1), jnp.float32),
            jax.ShapeDtypeStruct((n_tiles, C_out, 1), jnp.float32),
        ),
        grid=grid,
        in_specs=[
            pl.BlockSpec((Kc, TP), lambda i: (0, i)),
            pl.BlockSpec((C_out, Kc), lambda i: (0, 0)),
        ],
        out_specs=(
            pl.BlockSpec((C_out, TP), lambda i: (0, i)),
            pl.BlockSpec((1, C_out, 1), lambda i: (i, 0, 0)),
            pl.BlockSpec((1, C_out, 1), lambda i: (i, 0, 0)),
        ),
        compiler_params=parallel,
    )(X, Wm)

    # ---- BN batch statistics from the tiny per-tile partials (f32) ----
    s = jnp.sum(psum[:, :, 0], axis=0)          # (C_out,) sum of bias-free conv out
    sq = jnp.sum(psq[:, :, 0], axis=0)          # (C_out,) sum of squares
    mean0 = s / P                               # mean of conv output without bias
    var = jnp.maximum(sq / P - mean0 * mean0, 0.0)   # biased var; bias-invariant
    inv_std = jax.lax.rsqrt(var + eps)
    g = jnp.ones((C_out,), jnp.float32) if gamma is None else gamma.astype(jnp.float32)
    b = jnp.zeros((C_out,), jnp.float32) if beta is None else beta.astype(jnp.float32)
    mean = mean0 + bias                         # mean of conv output incl. bias
    scale = g * inv_std
    # out = (o_pre + bias - mean) * scale + beta  ==  o_pre * scale + shift
    shift = b + (bias - mean) * scale           # (conv bias cancels analytically)

    # ---- pass 2: apply normalization (lane-dense, tiled, parallel) ----
    out2d = pl.pallas_call(
        _bn_apply_kernel,
        out_shape=jax.ShapeDtypeStruct((C_out, P_pad), out_dtype),
        grid=grid,
        in_specs=[
            pl.BlockSpec((C_out, TP), lambda i: (0, i)),
            pl.BlockSpec((C_out, 1), lambda i: (0, 0)),
            pl.BlockSpec((C_out, 1), lambda i: (0, 0)),
        ],
        out_specs=pl.BlockSpec((C_out, TP), lambda i: (0, i)),
        compiler_params=parallel,
    )(o_pre, scale.reshape(C_out, 1), shift.reshape(C_out, 1))

    out = out2d[:, :P].reshape(C_out, N, Ho, Wo)
    return jnp.transpose(out, (1, 0, 2, 3))


# ----------------------------- reference ------------------------------------


def _reference_forward(x, *, stride, w1, w2=None, b1=None, b2=None,
                       gamma=None, beta=None, eps=1e-5):
    hp = jax.lax.Precision.HIGHEST
    if stride == 2:
        xr = jax.nn.relu(x)
        y = jnp.pad(xr, ((0, 0), (0, 0), (0, 1), (0, 1)))[:, :, 1:, 1:]
        o1 = jnp.einsum("nchw,oc->nohw", xr[:, :, ::2, ::2], w1, precision=hp)
        if b1 is not None:
            o1 = o1 + b1[None, :, None, None]
        o2 = jnp.einsum("nchw,oc->nohw", y[:, :, ::2, ::2], w2, precision=hp)
        if b2 is not None:
            o2 = o2 + b2[None, :, None, None]
        o = jnp.concatenate([o1, o2], axis=1)
    else:
        o = jnp.einsum("nchw,oc->nohw", x, w1, precision=hp)
        if b1 is not None:
            o = o + b1[None, :, None, None]
    mean = jnp.mean(o, axis=(0, 2, 3), keepdims=True)
    var = jnp.mean(jnp.square(o - mean), axis=(0, 2, 3), keepdims=True)
    o = (o - mean) * jax.lax.rsqrt(var + eps)
    if gamma is not None:
        o = o * gamma[None, :, None, None]
    if beta is not None:
        o = o + beta[None, :, None, None]
    return o


if __name__ == "__main__":
    key = jax.random.PRNGKey(0)
    k0, k1, k2, k3, k4, k5, k6 = jax.random.split(key, 7)

    N, C_in, H, W = 2, 4, 16, 16
    C_out = 8
    x = jax.random.normal(k0, (N, C_in, H, W), dtype=jnp.float32)

    # ---- stride == 2, affine=True (no conv bias; BN gamma/beta) ----
    C1, C2 = C_out // 2, C_out - C_out // 2
    w1 = jax.random.normal(k1, (C1, C_in), dtype=jnp.float32) * 0.5
    w2 = jax.random.normal(k2, (C2, C_in), dtype=jnp.float32) * 0.5
    gamma = 1.0 + 0.1 * jax.random.normal(k3, (C_out,), dtype=jnp.float32)
    beta = 0.1 * jax.random.normal(k4, (C_out,), dtype=jnp.float32)

    y2 = factorized_reduce_forward(x, stride=2, w1=w1, w2=w2, gamma=gamma, beta=beta)
    y2 = jax.block_until_ready(y2)
    y2_ref = _reference_forward(x, stride=2, w1=w1, w2=w2, gamma=gamma, beta=beta)
    assert y2.shape == (N, C_out, H // 2, W // 2), y2.shape
    assert bool(jnp.allclose(y2, y2_ref, atol=2e-2, rtol=2e-2)), \
        float(jnp.max(jnp.abs(y2 - y2_ref)))

    # ---- stride == 1, affine=False (conv bias; no BN gamma/beta) ----
    w = jax.random.normal(k5, (C_out, C_in), dtype=jnp.float32) * 0.5
    b = 0.1 * jax.random.normal(k6, (C_out,), dtype=jnp.float32)
    y1 = factorized_reduce_forward(x, stride=1, w1=w, b1=b)
    y1 = jax.block_until_ready(y1)
    y1_ref = _reference_forward(x, stride=1, w1=w, b1=b)
    assert y1.shape == (N, C_out, H, W), y1.shape
    assert bool(jnp.allclose(y1, y1_ref, atol=2e-2, rtol=2e-2)), \
        float(jnp.max(jnp.abs(y1 - y1_ref)))

    print("KERNEL_OK")
</pallas_src>

<mosaic_0001>
module attributes {stable_mosaic.version = 11 : i64} {
  func.func @_conv_stats_kernel(%arg0: i32, %arg1: memref<8x128xf32, #tpu.memory_space<vmem>>, %arg2: memref<8x8xf32, #tpu.memory_space<vmem>>, %arg3: memref<8x128xbf16, #tpu.memory_space<vmem>>, %arg4: memref<1x8x1xf32, #tpu.memory_space<vmem>>, %arg5: memref<1x8x1xf32, #tpu.memory_space<vmem>>) attributes {dimension_semantics = [#tpu.dimension_semantics<parallel>], iteration_bounds = array<i64: 1>, scalar_prefetch = 0 : i64, scratch_operands = 0 : i64, tpu.core_type = #tpu.core_type<tc>, window_params = [{transform_indices = @transform_0, window_bounds = array<i64: 8, 128>}, {pipeline_mode = #tpu.pipeline_mode<synchronous>, transform_indices = @transform_1, window_bounds = array<i64: 8, 8>}, {transform_indices = @transform_2, window_bounds = array<i64: 8, 128>}, {transform_indices = @transform_3, window_bounds = array<i64: 1, 8, 1>}, {transform_indices = @transform_4, window_bounds = array<i64: 1, 8, 1>}]} {
    %c0 = arith.constant 0 : index
    %c0_0 = arith.constant 0 : index
    %0 = vector.load %arg1[%c0, %c0_0] : memref<8x128xf32, #tpu.memory_space<vmem>>, vector<8x128xf32>
    %cst = arith.constant 0.000000e+00 : f32
    %1 = vector.broadcast %cst : f32 to vector<8x128xf32>
    %2 = arith.maximumf %0, %1 : vector<8x128xf32>
    %c0_1 = arith.constant 0 : index
    %c0_2 = arith.constant 0 : index
    %3 = vector.load %arg2[%c0_1, %c0_2] : memref<8x8xf32, #tpu.memory_space<vmem>>, vector<8x8xf32>
    %cst_3 = arith.constant dense<0.000000e+00> : vector<8x128xf32>
    %4 = tpu.matmul %3, %2, %cst_3 {dimension_numbers = #tpu.dot_dimension_numbers<[1], [0], [0], [1], [0, 0, 1, 1], [], []>} : vector<8x8xf32>, vector<8x128xf32>, vector<8x128xf32> -> vector<8x128xf32>
    %5 = arith.truncf %4 : vector<8x128xf32> to vector<8x128xbf16>
    %c0_4 = arith.constant 0 : index
    %c0_5 = arith.constant 0 : index
    %6 = vector.load %arg3[%c0_4, %c0_5] : memref<8x128xbf16, #tpu.memory_space<vmem>>, vector<8x128xbf16>
    tpu.vector_store %arg3[%c0_4, %c0_5], %5 {strides = array<i32>} : memref<8x128xbf16, #tpu.memory_space<vmem>>, vector<8x128xbf16>,
    %cst_6 = arith.constant dense<0.000000e+00> : vector<8xf32>
    %7 = vector.multi_reduction <add>, %4, %cst_6 [1] : vector<8x128xf32> to vector<8xf32>
    %8 = vector.shape_cast %7 : vector<8xf32> to vector<8x1xf32>
    %9 = vector.shape_cast %8 : vector<8x1xf32> to vector<1x8x1xf32>
    %c0_7 = arith.constant 0 : index
    %c0_8 = arith.constant 0 : index
    %c0_9 = arith.constant 0 : index
    %10 = vector.load %arg4[%c0_7, %c0_8, %c0_9] : memref<1x8x1xf32, #tpu.memory_space<vmem>>, vector<1x8x1xf32>
    tpu.vector_store %arg4[%c0_7, %c0_8, %c0_9], %9 {strides = array<i32>} : memref<1x8x1xf32, #tpu.memory_space<vmem>>, vector<1x8x1xf32>,
    %11 = arith.mulf %4, %4 : vector<8x128xf32>
    %cst_10 = arith.constant dense<0.000000e+00> : vector<8xf32>
    %12 = vector.multi_reduction <add>, %11, %cst_10 [1] : vector<8x128xf32> to vector<8xf32>
    %13 = vector.shape_cast %12 : vector<8xf32> to vector<8x1xf32>
    %14 = vector.shape_cast %13 : vector<8x1xf32> to vector<1x8x1xf32>
    %c0_11 = arith.constant 0 : index
    %c0_12 = arith.constant 0 : index
    %c0_13 = arith.constant 0 : index
    %15 = vector.load %arg5[%c0_11, %c0_12, %c0_13] : memref<1x8x1xf32, #tpu.memory_space<vmem>>, vector<1x8x1xf32>
    tpu.vector_store %arg5[%c0_11, %c0_12, %c0_13], %14 {strides = array<i32>} : memref<1x8x1xf32, #tpu.memory_space<vmem>>, vector<1x8x1xf32>,
    return
  }
  func.func @transform_0(%arg0: i32) -> (i32, i32) {
    %c0_i32 = arith.constant 0 : i32
    %c0_i32_0 = arith.constant 0 : i32
    return %c0_i32, %arg0 : i32, i32
  }
  func.func @transform_1(%arg0: i32) -> (i32, i32) {
    %c0_i32 = arith.constant 0 : i32
    %c0_i32_0 = arith.constant 0 : i32
    %c0_i32_1 = arith.constant 0 : i32
    return %c0_i32, %c0_i32_0 : i32, i32
  }
  func.func @transform_2(%arg0: i32) -> (i32, i32) {
    %c0_i32 = arith.constant 0 : i32
    %c0_i32_0 = arith.constant 0 : i32
    return %c0_i32, %arg0 : i32, i32
  }
  func.func @transform_3(%arg0: i32) -> (i32, i32, i32) {
    %c0_i32 = arith.constant 0 : i32
    %c0_i32_0 = arith.constant 0 : i32
    %c0_i32_1 = arith.constant 0 : i32
    return %arg0, %c0_i32, %c0_i32_0 : i32, i32, i32
  }
  func.func @transform_4(%arg0: i32) -> (i32, i32, i32) {
    %c0_i32 = arith.constant 0 : i32
    %c0_i32_0 = arith.constant 0 : i32
    %c0_i32_1 = arith.constant 0 : i32
    return %arg0, %c0_i32, %c0_i32_0 : i32, i32, i32
  }
}

</mosaic_0001>

<llo_original>
// kernel: tpu_custom_call.1
$region0: #{tpu_custom_call.1}
  #allocation0 [shape = 'u32[]', space=smem, size = 0x4, offset = 0x4, fixed_abs, tag = 'smem constant byte address 0x4 - core index']
  #allocation1 [shape = 'u32[144,128]{1,0:T(1,128)}', space=vmem, size = 0x12000, scoped, tag = 'internal scratch']
  %s0 = inlined_call_operand.hbm [shape: f32[8,128], index: 0, kind: input, shape index: {}]
  %s1 = inlined_call_operand.hbm [shape: f32[8,8], index: 1, kind: input, shape index: {}]
  %s2 = inlined_call_operand.hbm [shape: bf16[8,128], index: 2, kind: output, shape index: {0}]
  %s3 = inlined_call_operand.vmem [shape: f32[1,8,1], index: 3, kind: output, shape index: {1}]
  %s4 = inlined_call_operand.vmem [shape: f32[1,8,1], index: 4, kind: output, shape index: {2}]
  %5 = xla_tuple %s2, %s3, %s4
  %s6 = sld [smem:[#allocation0]]
  $region42: #{tpu_custom_call.1} parent=0
    _
  %s8 = ssub.s32 1, %s6
  %s9 = scalar_select 0, %s8, %s6
  $region1: #{tpu_custom_call.1} parent=0
    #allocation2 [shape = 'u8[4096]{0}', space=vmem, size = 0x1000, scoped, tag = 'input window, operand 0, single buffered']
    #allocation3 [shape = 's32[1]{0}', space=sflag, size = 0x4, scoped, tag = 'scoped memory for tpu_custom_call.1']
    #allocation4 [shape = 's32[1]{0}', space=sflag, size = 0x4, scoped, tag = 'scoped memory for tpu_custom_call.1']
    #allocation5 [shape = 'u8[4096]{0}', space=vmem, size = 0x1000, scoped, tag = 'input window, operand 1, single buffered']
    #allocation6 [shape = 's32[1]{0}', space=sflag, size = 0x4, scoped, tag = 'scoped memory for tpu_custom_call.1']
    #allocation7 [shape = 'u8[2048]{0}', space=vmem, size = 0x800, scoped, tag = 'output window, operand 0, single buffered']
    %10 = vsyncpa [#allocation3], 0
    %11 = vsyncpa [#allocation6], 0
    %12 = vsyncpa [#allocation4], 0
    // Predicated region
    $region2: #{tpu_custom_call.1} parent=1 // pred_check
      _
    $region3: #{tpu_custom_call.1} parent=1 // pred_check_branch
      %14 = sbr.rel (0) target = $region5
    $region4: #{tpu_custom_call.1} parent=1 // pred_region
      %s16 = ssub.s32 128, 128
      %17 = vsyncadd [#allocation3], %s16
      %s19 = sshll.u32 [#allocation2], 4
      %s20 = int_to_ptr.vmem [resolvable:$true] %s19
      %22 = dma.hbm_to_vmem [thread:$0]  %s0, 128, %s20, [#allocation3]
    $region5: #{tpu_custom_call.1} parent=1 // pred_fallthru
      _
    // Predicated region
    $region6: #{tpu_custom_call.1} parent=1 // pred_check
      _
    $region7: #{tpu_custom_call.1} parent=1 // pred_check_branch
      %24 = sbr.rel (0) target = $region9
    $region8: #{tpu_custom_call.1} parent=1 // pred_region
      %s26 = ssub.s32 128, 128
      %27 = vsyncadd [#allocation6], %s26
      %s29 = sshll.u32 [#allocation5], 4
      %s30 = int_to_ptr.vmem [resolvable:$true] %s29
      %32 = dma.hbm_to_vmem [thread:$0]  %s1, 128, %s30, [#allocation6]
    $region9: #{tpu_custom_call.1} parent=1 // pred_fallthru
      _
    // Predicated region
    $region10: #{tpu_custom_call.1} parent=1 // pred_check
      _
    $region11: #{tpu_custom_call.1} parent=1 // pred_check_branch
      %34 = sbr.rel (0) target = $region13
    $region12: #{tpu_custom_call.1} parent=1 // pred_region
      %35 = dma.done [#allocation3], 128
    $region13: #{tpu_custom_call.1} parent=1 // pred_fallthru
      _
    // Predicated region
    $region14: #{tpu_custom_call.1} parent=1 // pred_check
      _
    $region15: #{tpu_custom_call.1} parent=1 // pred_check_branch
      %37 = sbr.rel (0) target = $region17
    $region16: #{tpu_custom_call.1} parent=1 // pred_region
      %38 = dma.done [#allocation6], 128
    $region17: #{tpu_custom_call.1} parent=1 // pred_fallthru
      _
    %v39 = vld [vmem:[#allocation2] sm:$0xff]
    %v40 = vmax.f32 %v39, 0.0
    %v41 = vld [vmem:[#allocation5] sm:$0xff]
    %vm42 = vcmask 64512
    %v44 = vsel %vm42, %v41, 0
    %46 = vmatprep.subr.mxu0 0.0
    %47 = vmatpush1.msra.mxu0 0.0
    %48 = vmatprep.subr.mxu0 0.0
    %49 = vmatpush1.msra.mxu0 0.0
    %50 = vmatprep.subr.mxu0 0.0
    %51 = vmatpush1.msra.mxu0 0.0
    %52 = vmatprep.subr.mxu0 0.0
    %53 = vmatpush1.msra.mxu0 0.0
    %54 = vmatprep.subr.mxu0 0.0
    %55 = vmatpush1.msra.mxu0 0.0
    %56 = vmatprep.subr.mxu0 0.0
    %57 = vmatpush1.msra.mxu0 0.0
    %58 = vmatprep.subr.mxu0 0.0
    %59 = vmatpush1.msra.mxu0 0.0
    %60 = vmatprep.subr.mxu0 0.0
    %61 = vmatpush1.msra.mxu0 0.0
    %62 = vmatprep.subr.mxu0 0.0
    %63 = vmatpush1.msra.mxu0 0.0
    %64 = vmatprep.subr.mxu0 0.0
    %65 = vmatpush1.msra.mxu0 0.0
    %66 = vmatprep.subr.mxu0 0.0
    %67 = vmatpush1.msra.mxu0 0.0
    %68 = vmatprep.subr.mxu0 0.0
    %69 = vmatpush1.msra.mxu0 0.0
    %70 = vmatprep.subr.mxu0 0.0
    %71 = vmatpush1.msra.mxu0 0.0
    %72 = vmatprep.subr.mxu0 0.0
    %73 = vmatpush1.msra.mxu0 0.0
    %74 = vmatprep.subr.mxu0 0.0
    %75 = vmatpush1.msra.mxu0 0.0
    %76 = vmatprep.subr.mxu0 0.0
    %77 = vmatpush1.msra.mxu0 %v40
    %78 = vmatprep.subr.mxu0 0.0
    %79 = vmatpush2.msra.mxu0 0.0
    %80 = vmatprep.subr.mxu0 0.0
    %81 = vmatpush2.msra.mxu0 0.0
    %82 = vmatprep.subr.mxu0 0.0
    %83 = vmatpush2.msra.mxu0 0.0
    %84 = vmatprep.subr.mxu0 0.0
    %85 = vmatpush2.msra.mxu0 0.0
    %86 = vmatprep.subr.mxu0 0.0
    %87 = vmatpush2.msra.mxu0 0.0
    %88 = vmatprep.subr.mxu0 0.0
    %89 = vmatpush2.msra.mxu0 0.0
    %90 = vmatprep.subr.mxu0 0.0
    %91 = vmatpush2.msra.mxu0 0.0
    %92 = vmatprep.subr.mxu0 0.0
    %93 = vmatpush2.msra.mxu0 0.0
    %94 = vmatprep.subr.mxu0 0.0
    %95 = vmatpush2.msra.mxu0 0.0
    %96 = vmatprep.subr.mxu0 0.0
    %97 = vmatpush2.msra.mxu0 0.0
    %98 = vmatprep.subr.mxu0 0.0
    %99 = vmatpush2.msra.mxu0 0.0
    %100 = vmatprep.subr.mxu0 0.0
    %101 = vmatpush2.msra.mxu0 0.0
    %102 = vmatprep.subr.mxu0 0.0
    %103 = vmatpush2.msra.mxu0 0.0
    %104 = vmatprep.subr.mxu0 0.0
    %105 = vmatpush2.msra.mxu0 0.0
    %106 = vmatprep.subr.mxu0 0.0
    %107 = vmatpush2.msra.mxu0 0.0
    %108 = vmatprep.subr.mxu0 0.0
    %109 = vmatpush2.msra.mxu0 0.0
    %110 = vmatprep.mubr.f32.mxu0 0.0
    %111 = vmatmul.mubr.f32.gmra.mxu0 %v44
    %v112 = vpop.f32.mrf.mxu0
    %v113 = vadd.f32 0.0, %v112
    %v114 = vpop.f32.mrf.mxu0
    %115 = vdwg.mxu0
    %v116 = vpack.c.bf16 %v113, %v113
    %117 = vst [vmem:[#allocation7] sm:$0xf] %v116
    %118 = vadd.xlane.f32.xlu0 %v113
    %v119 = vpop.xlane.xlu0 %118
    %vm120 = vcmask 7168
    %121 = vst.msk [vmem:[%s3] sm:$0xff] %vm120, %v119
    %v122 = vmul.f32 %v113, %v113
    %123 = vadd.xlane.f32.xlu0 %v122
    %v124 = vpop.xlane.xlu0 %123
    %125 = vst.msk [vmem:[%s4] sm:$0xff] %vm120, %v124
    // Predicated region
    $region18: #{tpu_custom_call.1} parent=1 // pred_check
      _
    $region19: #{tpu_custom_call.1} parent=1 // pred_check_branch
      %127 = sbr.rel (0) target = $region21
    $region20: #{tpu_custom_call.1} parent=1 // pred_region
      %s129 = ssub.s32 64, 64
      %130 = vsyncadd [#allocation4], %s129
      %s132 = sshll.u32 [#allocation7], 4
      %s133 = int_to_ptr.vmem [resolvable:$true] %s132
      %135 = dma.vmem_to_hbm [thread:$0]  %s133, 64, %s2, [#allocation4]
    $region21: #{tpu_custom_call.1} parent=1 // pred_fallthru
      _
    // Predicated region
    $region22: #{tpu_custom_call.1} parent=1 // pred_check
      _
    $region23: #{tpu_custom_call.1} parent=1 // pred_check_branch
      %137 = sbr.rel (0) target = $region25
    $region24: #{tpu_custom_call.1} parent=1 // pred_region
      _
    $region25: #{tpu_custom_call.1} parent=1 // pred_fallthru
      _
    // Predicated region
    $region26: #{tpu_custom_call.1} parent=1 // pred_check
      _
    $region27: #{tpu_custom_call.1} parent=1 // pred_check_branch
      %139 = sbr.rel (0) target = $region29
    $region28: #{tpu_custom_call.1} parent=1 // pred_region
      _
    $region29: #{tpu_custom_call.1} parent=1 // pred_fallthru
      _
    // Predicated region
    $region30: #{tpu_custom_call.1} parent=1 // pred_check
      _
    $region31: #{tpu_custom_call.1} parent=1 // pred_check_branch
      %141 = sbr.rel (0) target = $region33
    $region32: #{tpu_custom_call.1} parent=1 // pred_region
      %142 = dma.done [#allocation4], 64
    $region33: #{tpu_custom_call.1} parent=1 // pred_fallthru
      _
    // Predicated region
    $region34: #{tpu_custom_call.1} parent=1 // pred_check
      _
    $region35: #{tpu_custom_call.1} parent=1 // pred_check_branch
      %144 = sbr.rel (0) target = $region37
    $region36: #{tpu_custom_call.1} parent=1 // pred_region
      _
    $region37: #{tpu_custom_call.1} parent=1 // pred_fallthru
      _
    // Predicated region
    $region38: #{tpu_custom_call.1} parent=1 // pred_check
      _
    $region39: #{tpu_custom_call.1} parent=1 // pred_check_branch
      %146 = sbr.rel (0) target = $region41
    $region40: #{tpu_custom_call.1} parent=1 // pred_region
      _
    $region41: #{tpu_custom_call.1} parent=1 // pred_fallthru
      _
    %147 = vsyncpa [#allocation3], 1
    %148 = vsyncpa [#allocation6], 1
    %149 = vsyncpa [#allocation4], 1

</llo_original>
